<compile_context>
chip_gen: v6e
topology: v6e:2x2x1
jax: 0.10.0
libtpu: 0.0.40
codegen_flags: <defaults>
</compile_context>

<pallas_src>
import functools

import numpy as np
import jax
import jax.numpy as jnp
from jax.experimental import pallas as pl
from jax.experimental.pallas import tpu as pltpu


# ----------------------------- tiling helpers ------------------------------

def _pick_tile_p(H, W, target=2048):
    """Largest row-aligned spatial tile (rows*W) that divides H*W, is 8-sublane
    aligned (or the full extent), and stays <= `target` positions."""
    best = None
    for rows in range(1, H + 1):
        if H % rows == 0:
            tp = rows * W
            if tp <= target and (tp % 8 == 0 or tp == H * W):
                best = tp
    return best if best is not None else H * W


def _largest_divisor_leq(n, cap):
    d = 1
    for k in range(1, min(n, cap) + 1):
        if n % k == 0:
            d = k
    return d


def _pad_rows_flatten(x):
    """(N, H, W, C) -> (N, (H+2)*W + 2, C): zero-pad H by 1 row each side, flatten
    spatial row-major, then pad one extra zero position at both ends so all nine
    3x3-tap shifted windows are in-bounds."""
    N, H, W, C = x.shape
    xp = jnp.pad(x, ((0, 0), (1, 1), (0, 0), (0, 0))).reshape(N, (H + 2) * W, C)
    return jnp.pad(xp, ((0, 0), (1, 1), (0, 0)))


def _edge_mask(tile_p, W, dtype):
    """(tile_p, 2) masks: col 0 zeros positions with w == 0 (left taps wrap there),
    col 1 zeros positions with w == W-1 (right taps wrap there)."""
    p = np.arange(tile_p)
    left = (p % W != 0).astype(np.float32)
    right = (p % W != W - 1).astype(np.float32)
    return jnp.asarray(np.stack([left, right], axis=1), dtype=dtype)


# ----------------------------- Pallas kernels ------------------------------

def _conv3x3_kernel(xa_ref, xb_ref, wa_ref, wb_ref, b_ref, mask_ref, o_ref, *,
                    w_cols, tile_p):
    # xa_ref: (1, Lp, Ca)  padded/flattened prev-level feature  (full image, resident)
    # xb_ref: (1, Lp, Cb)  padded/flattened upsampled feature   (fused concat input)
    # wa_ref: (9, Ca, Cout), wb_ref: (9, Cb, Cout)  BN-scale-folded 3x3 weights per tap
    # b_ref : (1, Cout)    folded BN bias
    # mask_ref: (tile_p, 2) edge masks (left, right)
    # o_ref : (1, tile_p, Cout)
    base = pl.program_id(1) * tile_p
    if tile_p % 8 == 0:
        base = pl.multiple_of(base, 8)
    ml = mask_ref[:, pl.ds(0, 1)]          # (tile_p, 1)
    mr = mask_ref[:, pl.ds(1, 1)]
    cout = o_ref.shape[2]
    acc = jnp.zeros((tile_p, cout), jnp.float32)
    for dy in range(3):
        for dx in range(3):
            k = dy * 3 + dx
            off = base + dy * w_cols + dx
            sa = xa_ref[0, pl.ds(off, tile_p), :]
            sb = xb_ref[0, pl.ds(off, tile_p), :]
            if dx == 0:                    # left neighbour: zero wrapped column w == 0
                sa = sa * ml
                sb = sb * ml
            elif dx == 2:                  # right neighbour: zero wrapped column w == W-1
                sa = sa * mr
                sb = sb * mr
            acc += jnp.dot(sa, wa_ref[k], preferred_element_type=jnp.float32)
            acc += jnp.dot(sb, wb_ref[k], preferred_element_type=jnp.float32)
    y = jnp.maximum(acc + b_ref[...], 0.0)                 # folded BN bias + ReLU
    o_ref[0] = y.astype(o_ref.dtype)


def _conv1x1_kernel(*refs, n_in):
    # refs = x_0..x_{V-1} (1, tile_p, C_j), w_0..w_{V-1} (C_j, classes), bias (1, classes),
    #        out (1, tile_p, classes).  Fuses the hypercolumn channel concat.
    x_refs = refs[:n_in]
    w_refs = refs[n_in:2 * n_in]
    b_ref = refs[2 * n_in]
    o_ref = refs[2 * n_in + 1]
    acc = jnp.zeros(o_ref.shape[1:], jnp.float32)
    for j in range(n_in):
        acc = acc + jnp.dot(x_refs[j][0], w_refs[j][...],
                            preferred_element_type=jnp.float32)
    o_ref[0] = (acc + b_ref[...]).astype(o_ref.dtype)


def _upsample_rows_kernel(ah_ref, x_ref, o_ref):
    # ah_ref: (H2, H); x_ref: (1, H, W*C); o_ref: (1, H2, W*C)
    o_ref[0] = jnp.dot(ah_ref[...], x_ref[0],
                       preferred_element_type=jnp.float32).astype(o_ref.dtype)


def _upsample_cols_kernel(aw_ref, x_ref, o_ref, *, tile_r):
    # aw_ref: (W2, W); x_ref: (1, tile_r, W, C); o_ref: (1, tile_r, W2, C)
    aw = aw_ref[...]
    for r in range(tile_r):
        o_ref[0, r] = jnp.dot(aw, x_ref[0, r],
                              preferred_element_type=jnp.float32).astype(o_ref.dtype)


# ----------------------------- op wrappers ------------------------------

def conv3x3_concat_bn_relu(xa, xb, wa, wb, bias):
    """conv3x3(pad=1, no bias) on concat([xa, xb], channel) + folded BN + ReLU.

    xa: (N,H,W,Ca), xb: (N,H,W,Cb);  wa: (9,Ca,Cout), wb: (9,Cb,Cout) with tap index
    k = dy*3+dx and BN scale already folded in;  bias: (1, Cout).
    """
    N, H, W, Ca = xa.shape
    Cb = xb.shape[3]
    Cout = wa.shape[2]
    tile_p = _pick_tile_p(H, W)
    n_tiles = (H * W) // tile_p
    xa_f = _pad_rows_flatten(xa)
    xb_f = _pad_rows_flatten(xb)
    Lp = xa_f.shape[1]
    mask = _edge_mask(tile_p, W, xa.dtype)
    kernel = functools.partial(_conv3x3_kernel, w_cols=W, tile_p=tile_p)
    out = pl.pallas_call(
        kernel,
        out_shape=jax.ShapeDtypeStruct((N, H * W, Cout), xa.dtype),
        grid=(N, n_tiles),
        in_specs=[
            pl.BlockSpec((1, Lp, Ca), lambda n, t: (n, 0, 0)),
            pl.BlockSpec((1, Lp, Cb), lambda n, t: (n, 0, 0)),
            pl.BlockSpec((9, Ca, Cout), lambda n, t: (0, 0, 0)),
            pl.BlockSpec((9, Cb, Cout), lambda n, t: (0, 0, 0)),
            pl.BlockSpec((1, Cout), lambda n, t: (0, 0)),
            pl.BlockSpec((tile_p, 2), lambda n, t: (0, 0)),
        ],
        out_specs=pl.BlockSpec((1, tile_p, Cout), lambda n, t: (n, t, 0)),
        compiler_params=pltpu.CompilerParams(
            dimension_semantics=("parallel", "parallel")),
    )(xa_f, xb_f, wa, wb, bias, mask)
    return out.reshape(N, H, W, Cout)
    # TODO(synk): for very large feature maps the full padded image is kept resident in
    # VMEM; a halo-tiled manual-DMA variant would bound VMEM further (v7x, 64 MiB).


def conv1x1_concat_bias(x_list, w_full, bias):
    """logit head: conv1x1(concat(x_list, channel)) + bias, concat fused in-kernel."""
    N, H, W, _ = x_list[0].shape
    chans = [int(x.shape[3]) for x in x_list]
    classes = w_full.shape[1]
    tile_p = _pick_tile_p(H, W)
    n_tiles = (H * W) // tile_p
    xs = [x.reshape(N, H * W, c) for x, c in zip(x_list, chans)]
    offs = np.cumsum([0] + chans)
    ws = [w_full[int(offs[j]):int(offs[j + 1]), :] for j in range(len(chans))]
    n_in = len(xs)
    kernel = functools.partial(_conv1x1_kernel, n_in=n_in)
    in_specs = (
        [pl.BlockSpec((1, tile_p, c), lambda n, t: (n, t, 0)) for c in chans]
        + [pl.BlockSpec((c, classes), lambda n, t: (0, 0)) for c in chans]
        + [pl.BlockSpec((1, classes), lambda n, t: (0, 0))]
    )
    out = pl.pallas_call(
        kernel,
        out_shape=jax.ShapeDtypeStruct((N, H * W, classes), x_list[0].dtype),
        grid=(N, n_tiles),
        in_specs=in_specs,
        out_specs=pl.BlockSpec((1, tile_p, classes), lambda n, t: (n, t, 0)),
        compiler_params=pltpu.CompilerParams(
            dimension_semantics=("parallel", "parallel")),
    )(*xs, *ws, bias)
    return out.reshape(N, H, W, classes)


def _interp_matrix_1d(in_size, out_size, mode):
    m = np.zeros((out_size, in_size), np.float32)
    if mode == "bilinear":  # align_corners=True (the module passes it explicitly)
        if out_size == 1 or in_size == 1:
            src = np.zeros((out_size,), np.float64)
        else:
            src = np.arange(out_size, dtype=np.float64) * (in_size - 1) / (out_size - 1)
        i0 = np.clip(np.floor(src).astype(np.int64), 0, in_size - 1)
        i1 = np.minimum(i0 + 1, in_size - 1)
        frac = (src - i0).astype(np.float32)
        for o in range(out_size):
            m[o, i0[o]] += 1.0 - frac[o]
            m[o, i1[o]] += frac[o]
    elif mode == "nearest":
        idx = np.minimum((np.arange(out_size) * in_size) // out_size, in_size - 1)
        m[np.arange(out_size), idx] = 1.0
    else:
        raise ValueError(mode)
    return m


def upsample2d(x, sf, mode):
    """F.interpolate(x, scale_factor=sf, mode=mode, align_corners=True), separable:
    one row matmul per batch + per-row column matmuls on a row-tiled grid."""
    N, H, W, C = x.shape
    H2, W2 = H * sf, W * sf
    ah = jnp.asarray(_interp_matrix_1d(H, H2, mode))     # (H2, H), tiny
    aw = jnp.asarray(_interp_matrix_1d(W, W2, mode))     # (W2, W), tiny

    # H axis: (H2,H) @ (H, W*C) per batch element.
    x2 = x.reshape(N, H, W * C)
    y = pl.pallas_call(
        _upsample_rows_kernel,
        out_shape=jax.ShapeDtypeStruct((N, H2, W * C), x.dtype),
        grid=(N,),
        in_specs=[pl.BlockSpec((H2, H), lambda n: (0, 0)),
                  pl.BlockSpec((1, H, W * C), lambda n: (n, 0, 0))],
        out_specs=pl.BlockSpec((1, H2, W * C), lambda n: (n, 0, 0)),
        compiler_params=pltpu.CompilerParams(dimension_semantics=("parallel",)),
    )(ah, x2)
    y = y.reshape(N, H2, W, C)

    # W axis: per output row, (W2,W) @ (W, C); rows tiled across the grid.
    tile_r = _largest_divisor_leq(H2, 8)
    kernel = functools.partial(_upsample_cols_kernel, tile_r=tile_r)
    out = pl.pallas_call(
        kernel,
        out_shape=jax.ShapeDtypeStruct((N, H2, W2, C), x.dtype),
        grid=(N, H2 // tile_r),
        in_specs=[pl.BlockSpec((W2, W), lambda n, t: (0, 0)),
                  pl.BlockSpec((1, tile_r, W, C), lambda n, t: (n, t, 0, 0))],
        out_specs=pl.BlockSpec((1, tile_r, W2, C), lambda n, t: (n, t, 0, 0)),
        compiler_params=pltpu.CompilerParams(
            dimension_semantics=("parallel", "parallel")),
    )(aw, y)
    return out


# ----------------------------- DecoderCNN2d ------------------------------

def init_decoder_params(key, classes, encoder_dims, hypercolumn_indexes):
    """Deterministic synthetic params matching DecoderCNN2d.__init__ shapes.
    BatchNorm (inference form) is folded: scale into the conv weights, shift into bias."""
    eps = 1e-5
    convs = []
    for i in range(1, len(encoder_dims)):
        ca, cb = encoder_dims[i - 1], encoder_dims[i]     # concat order: [feat[i-1], up(feat[i])]
        cout = encoder_dims[i - 1]
        key, k1, k2, k3, k4, k5 = jax.random.split(key, 6)
        w = 0.1 * jax.random.normal(k1, (9, ca + cb, cout), jnp.float32)   # conv3x3, bias=False
        gamma = 1.0 + 0.1 * jax.random.normal(k2, (cout,), jnp.float32)    # BN weight
        beta = 0.1 * jax.random.normal(k3, (cout,), jnp.float32)           # BN bias
        rmean = 0.05 * jax.random.normal(k4, (cout,), jnp.float32)         # BN running_mean
        rvar = 1.0 + 0.1 * jax.random.uniform(k5, (cout,), jnp.float32)    # BN running_var
        scale = gamma / jnp.sqrt(rvar + eps)
        bias = (beta - rmean * scale).reshape(1, cout)
        w_folded = w * scale[None, None, :]
        convs.append((w_folded[:, :ca, :], w_folded[:, ca:, :], bias))
    cin_logit = sum(encoder_dims[i] for i in hypercolumn_indexes)
    key, k1, k2 = jax.random.split(key, 3)
    wl = 0.1 * jax.random.normal(k1, (cin_logit, classes), jnp.float32)    # conv1x1 weight
    bl = 0.1 * jax.random.normal(k2, (1, classes), jnp.float32)            # conv1x1 bias
    return {"convs": convs, "logit_w": wl, "logit_b": bl}


def decoder_cnn2d_forward(features_nchw, params, *, upscale_mode, hypercolumn_indexes,
                          logit_upscale_factor, logit_after_upsample=False):
    """Mirrors DecoderCNN2d.forward(features, feature_only=False). Inputs/outputs NCHW."""
    # TODO(synk): logit_after_upsample=True references an undefined `feature` variable in
    #             the reference code (would raise); only the False path is implemented.
    assert not logit_after_upsample
    feats = [jnp.transpose(f, (0, 2, 3, 1)) for f in features_nchw]   # NCHW -> NHWC

    # top-down FPN refinement: upsample(2x) -> (fused) concat + conv3x3 + BN + ReLU
    for i in range(len(feats) - 1, 0, -1):
        feat_up = upsample2d(feats[i], 2, upscale_mode)
        wa, wb, b = params["convs"][i - 1]
        feats[i - 1] = conv3x3_concat_bn_relu(feats[i - 1], feat_up, wa, wb, b)

    # hypercolumn features (concat fused into the logit head kernel)
    hyper = [feats[0]]
    for i in hypercolumn_indexes[1:]:
        hyper.append(upsample2d(feats[i], logit_upscale_factor * i, "bilinear"))

    logit = conv1x1_concat_bias(hyper, params["logit_w"], params["logit_b"])
    if logit_upscale_factor > 1:
        logit = upsample2d(logit, logit_upscale_factor, "bilinear")

    return jnp.transpose(logit, (0, 3, 1, 2))                         # NHWC -> NCHW


# ----------------------------- demo ------------------------------

if __name__ == "__main__":
    classes = 2
    encoder_dims = [8, 16, 32]
    hypercolumn_indexes = [0, 1]
    logit_upscale_factor = 2
    upscale_mode = "bilinear"
    N, H0, W0 = 2, 16, 16

    key = jax.random.PRNGKey(0)
    key_feats, key_params = jax.random.split(key)

    # encoder pyramid: level l has spatial H0/2**l and encoder_dims[l] channels (NCHW)
    features = []
    kf = key_feats
    for lvl, c in enumerate(encoder_dims):
        kf, sub = jax.random.split(kf)
        features.append(jax.random.normal(
            sub, (N, c, H0 // (2 ** lvl), W0 // (2 ** lvl)), jnp.float32))

    params = init_decoder_params(key_params, classes, encoder_dims, hypercolumn_indexes)

    out = decoder_cnn2d_forward(
        features, params,
        upscale_mode=upscale_mode,
        hypercolumn_indexes=hypercolumn_indexes,
        logit_upscale_factor=logit_upscale_factor,
        logit_after_upsample=False,
    )
    out = jax.block_until_ready(out)
    assert out.shape == (N, classes, H0 * logit_upscale_factor, W0 * logit_upscale_factor), out.shape
    assert bool(jnp.all(jnp.isfinite(out)))
    print("KERNEL_OK")
</pallas_src>

<mosaic_0001>
module attributes {stable_mosaic.version = 11 : i64} {
  func.func @_upsample_rows_kernel(%arg0: i32, %arg1: memref<8x4xf32, #tpu.memory_space<vmem>>, %arg2: memref<1x4x128xf32, #tpu.memory_space<vmem>>, %arg3: memref<1x8x128xf32, #tpu.memory_space<vmem>>) attributes {dimension_semantics = [#tpu.dimension_semantics<parallel>], iteration_bounds = array<i64: 2>, scalar_prefetch = 0 : i64, scratch_operands = 0 : i64, tpu.core_type = #tpu.core_type<tc>, window_params = [{pipeline_mode = #tpu.pipeline_mode<synchronous>, transform_indices = @transform_0, window_bounds = array<i64: 8, 4>}, {transform_indices = @transform_1, window_bounds = array<i64: 1, 4, 128>}, {transform_indices = @transform_2, window_bounds = array<i64: 1, 8, 128>}]} {
    %c0 = arith.constant 0 : index
    %c0_0 = arith.constant 0 : index
    %0 = vector.load %arg1[%c0, %c0_0] : memref<8x4xf32, #tpu.memory_space<vmem>>, vector<8x4xf32>
    %c0_1 = arith.constant 0 : index
    %c0_2 = arith.constant 0 : index
    %c0_3 = arith.constant 0 : index
    %1 = vector.load %arg2[%c0_1, %c0_2, %c0_3] : memref<1x4x128xf32, #tpu.memory_space<vmem>>, vector<1x4x128xf32>
    %2 = vector.shape_cast %1 : vector<1x4x128xf32> to vector<4x128xf32>
    %cst = arith.constant dense<0.000000e+00> : vector<8x128xf32>
    %3 = tpu.matmul %0, %2, %cst {dimension_numbers = #tpu.dot_dimension_numbers<[1], [0], [0], [1], [0, 0, 1, 1], [], []>} : vector<8x4xf32>, vector<4x128xf32>, vector<8x128xf32> -> vector<8x128xf32>
    %c0_4 = arith.constant 0 : index
    %c0_5 = arith.constant 0 : index
    %c0_6 = arith.constant 0 : index
    %4 = vector.load %arg3[%c0_4, %c0_5, %c0_6] : memref<1x8x128xf32, #tpu.memory_space<vmem>>, vector<1x8x128xf32>
    %5 = vector.shape_cast %4 : vector<1x8x128xf32> to vector<8x128xf32>
    %6 = vector.shape_cast %3 : vector<8x128xf32> to vector<1x8x128xf32>
    tpu.vector_store %arg3[%c0_4, %c0_5, %c0_6], %6 {strides = array<i32>} : memref<1x8x128xf32, #tpu.memory_space<vmem>>, vector<1x8x128xf32>,
    return
  }
  func.func @transform_0(%arg0: i32) -> (i32, i32) {
    %c0_i32 = arith.constant 0 : i32
    %c0_i32_0 = arith.constant 0 : i32
    %c0_i32_1 = arith.constant 0 : i32
    return %c0_i32, %c0_i32_0 : i32, i32
  }
  func.func @transform_1(%arg0: i32) -> (i32, i32, i32) {
    %c0_i32 = arith.constant 0 : i32
    %c0_i32_0 = arith.constant 0 : i32
    %c0_i32_1 = arith.constant 0 : i32
    return %arg0, %c0_i32, %c0_i32_0 : i32, i32, i32
  }
  func.func @transform_2(%arg0: i32) -> (i32, i32, i32) {
    %c0_i32 = arith.constant 0 : i32
    %c0_i32_0 = arith.constant 0 : i32
    %c0_i32_1 = arith.constant 0 : i32
    return %arg0, %c0_i32, %c0_i32_0 : i32, i32, i32
  }
}

</mosaic_0001>

<llo_original>
// kernel: tpu_custom_call.1
$region0: #{tpu_custom_call.1}
  #allocation0 [shape = 'u32[]', space=smem, size = 0x4, offset = 0x4, fixed_abs, tag = 'smem constant byte address 0x4 - core index']
  #allocation1 [shape = 'u32[144,128]{1,0:T(1,128)}', space=vmem, size = 0x12000, scoped, tag = 'internal scratch']
  %s0 = inlined_call_operand.vmem [shape: f32[8,4], index: 0, kind: input, shape index: {}]
  %s1 = inlined_call_operand.vmem [shape: f32[2,4,128], index: 1, kind: input, shape index: {}]
  %s2 = inlined_call_operand.hbm [shape: f32[2,8,128], index: 2, kind: output, shape index: {}]
  %s3 = sld [smem:[#allocation0]]
  $region41: #{tpu_custom_call.1} parent=0
    _
  %s5 = ssub.s32 1, %s3
  %s6 = scalar_select 0, %s5, %s3
  $region1: #{tpu_custom_call.1} parent=0
    #allocation2 [shape = 'u8[8192]{0}', space=vmem, size = 0x2000, scoped, tag = 'output window, operand 0']
    #allocation3 [shape = 's32[2]{0}', space=sflag, size = 0x8, scoped, tag = 'scoped memory for tpu_custom_call.1']
    %7 = vsyncpa [#allocation3], 0
    %s8 = scalar_lea.sflag [#allocation3], 1
    %9 = vsyncpa %s8, 0
    loop: start=0, step=1, limit=4
    $region2: #{tpu_custom_call.1} parent=1 // loop_pre_header
      _
    $region3: #{tpu_custom_call.1} parent=1 // loop_header
      %s11 = sphi 0, %s15
      %p12 = scmp.ge.s32.totalorder %s11, 4
      %s19 = sphi 0, %s19
      %s21 = sphi 0, %s19
      %s22 = sphi 0, %s21
      %s36 = sphi 0, %s22
      %s42 = sphi 0, %s44
      %s45 = sphi 0, %s42
      %s46 = sphi 0, %s45
      %s62 = sphi 0, %s46
      %s68 = sphi 0, %s70
      %s71 = sphi 0, %s68
      %s72 = sphi 0, %s71
      %s88 = sphi 0, %s72
    $region4: #{tpu_custom_call.1} parent=1 // loop_header_branch
      %14 = sbr.rel (%p12) target = $region8
    $region5: #{tpu_custom_call.1} parent=1 // loop_body
      %s16 = ssub.s32 %s11, 1
      %s17 = ssub.s32 %s11, 2
      %s18 = sadd.s32 %s11, 1
      %s20 = sadd.s32 %s19, 1
      %p23 = scmp.eq.s32.totalorder %s11, 1
      %p24 = scmp.ne.s32.totalorder %s19, %s21
      %p25 = scmp.eq.s32.totalorder %s11, 0
      %p26 = por %p24, %p25
      %p27 = scmp.ne.s32.totalorder %s19, %s21
      %p28 = scmp.eq.s32.totalorder %s16, 1
      %p29 = por %p27, %p28
      %p30 = scmp.ne.s32.totalorder %s21, %s22
      %p31 = scmp.eq.s32.totalorder %s16, 0
      %p32 = por %p30, %p31
      %p33 = scmp.ne.s32.totalorder %s21, %s22
      %p34 = scmp.eq.s32.totalorder %s17, 1
      %p35 = por %p33, %p34
      %p37 = scmp.ne.s32.totalorder %s22, %s36
      %p38 = scmp.eq.s32.totalorder %s17, 0
      %p39 = por %p37, %p38
      %s40 = ssub.s32 %s11, %s18
      %p41 = scmp.eq.s32.totalorder %s40, 0
      %s43 = sadd.s32 %s42, 1
      %s44 = scalar_select %p41, %s42, %s43
      %p47 = pneg %p41
      %p48 = scmp.eq.s32.totalorder %s11, 1
      %p49 = por %p47, %p48
      %p50 = scmp.ne.s32.totalorder %s42, %s45
      %p51 = scmp.eq.s32.totalorder %s11, 0
      %p52 = por %p50, %p51
      %p53 = scmp.ne.s32.totalorder %s42, %s45
      %p54 = scmp.eq.s32.totalorder %s16, 1
      %p55 = por %p53, %p54
      %p56 = scmp.ne.s32.totalorder %s45, %s46
      %p57 = scmp.eq.s32.totalorder %s16, 0
      %p58 = por %p56, %p57
      %p59 = scmp.ne.s32.totalorder %s45, %s46
      %p60 = scmp.eq.s32.totalorder %s17, 1
      %p61 = por %p59, %p60
      %p63 = scmp.ne.s32.totalorder %s46, %s62
      %p64 = scmp.eq.s32.totalorder %s17, 0
      %p65 = por %p63, %p64
      %s66 = ssub.s32 %s11, %s18
      %p67 = scmp.eq.s32.totalorder %s66, 0
      %s69 = sadd.s32 %s68, 1
      %s70 = scalar_select %p67, %s68, %s69
      %p73 = pneg %p67
      %p74 = scmp.eq.s32.totalorder %s11, 1
      %p75 = por %p73, %p74
      %p76 = scmp.ne.s32.totalorder %s68, %s71
      %p77 = scmp.eq.s32.totalorder %s11, 0
      %p78 = por %p76, %p77
      %p79 = scmp.ne.s32.totalorder %s68, %s71
      %p80 = scmp.eq.s32.totalorder %s16, 1
      %p81 = por %p79, %p80
      %p82 = scmp.ne.s32.totalorder %s71, %s72
      %p83 = scmp.eq.s32.totalorder %s16, 0
      %p84 = por %p82, %p83
      %p85 = scmp.ne.s32.totalorder %s71, %s72
      %p86 = scmp.eq.s32.totalorder %s17, 1
      %p87 = por %p85, %p86
      %p89 = scmp.ne.s32.totalorder %s72, %s88
      %p90 = scmp.eq.s32.totalorder %s17, 0
      %p91 = por %p89, %p90
      %p92 = scmp.le.s32.totalorder 1, %s11
      %p93 = scmp.lt.s32.totalorder %s11, 3
      %p94 = pnand %p92, %p93
      %p95 = pneg %p94
      // Predicated region
      $region9: #{tpu_custom_call.1} parent=5 // pred_check
        _
      $region10: #{tpu_custom_call.1} parent=5 // pred_check_branch
        %97 = sbr.rel (%p94) target = $region12
      $region11: #{tpu_custom_call.1} parent=5 // pred_region
        %s98 = ssub.s32 %s11, 1
        // Predicated region
        $region13: #{tpu_custom_call.1} parent=11 // pred_check
          %p99 = pneg %p32
        $region14: #{tpu_custom_call.1} parent=11 // pred_check_branch
          %101 = sbr.rel (%p99) target = $region16
        $region15: #{tpu_custom_call.1} parent=11 // pred_region
          _
        $region16: #{tpu_custom_call.1} parent=11 // pred_fallthru
          _
      $region12: #{tpu_custom_call.1} parent=5 // pred_fallthru
        _
      %p102 = scmp.lt.s32.totalorder %s11, 2
      // Predicated region
      $region17: #{tpu_custom_call.1} parent=5 // pred_check
        %p103 = pneg %p102
      $region18: #{tpu_custom_call.1} parent=5 // pred_check_branch
        %105 = sbr.rel (%p103) target = $region20
      $region19: #{tpu_custom_call.1} parent=5 // pred_region
        // Predicated region
        $region21: #{tpu_custom_call.1} parent=19 // pred_check
          %p106 = pneg %p52
        $region22: #{tpu_custom_call.1} parent=19 // pred_check_branch
          %108 = sbr.rel (%p106) target = $region24
        $region23: #{tpu_custom_call.1} parent=19 // pred_region
          %p109 = scmp.lt.s32.totalorder %s11, 1
          %s110 = scalar_select %p109, %s11, 1
          %s111 = smul.addr %s110, 4
          %s112 = scalar_lea.vmem %s1, %s111
        $region24: #{tpu_custom_call.1} parent=19 // pred_fallthru
          _
      $region20: #{tpu_custom_call.1} parent=5 // pred_fallthru
        _
      %p113 = scmp.le.s32.totalorder 1, %s11
      %p114 = scmp.lt.s32.totalorder %s11, 3
      %p115 = pnand %p113, %p114
      %p116 = pneg %p115
      // Predicated region
      $region25: #{tpu_custom_call.1} parent=5 // pred_check
        _
      $region26: #{tpu_custom_call.1} parent=5 // pred_check_branch
        %118 = sbr.rel (%p115) target = $region28
      $region27: #{tpu_custom_call.1} parent=5 // pred_region
        %s119 = ssub.s32 %s11, 1
        %p120 = pneg %p32
        %p121 = pneg %p29
        %p122 = scmp.lt.s32.totalorder %s16, 1
        %s123 = scalar_select %p122, %s16, 1
        %s124 = smul.addr %s123, 4
        %s125 = scalar_lea.vmem %s1, %s124
        %p126 = pneg %p58
        %p127 = pneg %p55
        %p128 = pneg %p84
        %p129 = pneg %p81
        %s130 = sand.u32 %s71, 1
        %s131 = scalar_lea.sflag [#allocation3], %s130
        %s132 = sand.u32 %s71, 1
        %s133 = smul.addr %s132, 8
        %s134 = scalar_lea.vmem [#allocation2], %s133
        %p135 = scmp.lt.s32.totalorder %s16, 1
        %s136 = scalar_select %p135, %s16, 1
        %s137 = smul.addr %s136, 4
        %s138 = scalar_lea.vmem %s1, %s137
        %v139 = vld [vmem:[%s0] sm:$0xff]
        %v140 = vld [vmem:[%s138] sm:$0xf]
        %vm141 = vcmask 31744
        %v143 = vsel %vm141, %v139, 0
        %vm145 = vcmask 1043456
        %v147 = vsel %vm145, %v140, 0
        %149 = vmatprep.subr.mxu0 0.0
        %150 = vmatpush1.msra.mxu0 0.0
        %151 = vmatprep.subr.mxu0 0.0
        %152 = vmatpush1.msra.mxu0 0.0
        %153 = vmatprep.subr.mxu0 0.0
        %154 = vmatpush1.msra.mxu0 0.0
        %155 = vmatprep.subr.mxu0 0.0
        %156 = vmatpush1.msra.mxu0 0.0
        %157 = vmatprep.subr.mxu0 0.0
        %158 = vmatpush1.msra.mxu0 0.0
        %159 = vmatprep.subr.mxu0 0.0
        %160 = vmatpush1.msra.mxu0 0.0
        %161 = vmatprep.subr.mxu0 0.0
        %162 = vmatpush1.msra.mxu0 0.0
        %163 = vmatprep.subr.mxu0 0.0
        %164 = vmatpush1.msra.mxu0 0.0
        %165 = vmatprep.subr.mxu0 0.0
        %166 = vmatpush1.msra.mxu0 0.0
        %167 = vmatprep.subr.mxu0 0.0
        %168 = vmatpush1.msra.mxu0 0.0
        %169 = vmatprep.subr.mxu0 0.0
        %170 = vmatpush1.msra.mxu0 0.0
        %171 = vmatprep.subr.mxu0 0.0
        %172 = vmatpush1.msra.mxu0 0.0
        %173 = vmatprep.subr.mxu0 0.0
        %174 = vmatpush1.msra.mxu0 0.0
        %175 = vmatprep.subr.mxu0 0.0
        %176 = vmatpush1.msra.mxu0 0.0
        %177 = vmatprep.subr.mxu0 0.0
        %178 = vmatpush1.msra.mxu0 0.0
        %179 = vmatprep.subr.mxu0 0.0
        %180 = vmatpush1.msra.mxu0 %v147
        %181 = vmatprep.subr.mxu0 0.0
        %182 = vmatpush2.msra.mxu0 0.0
        %183 = vmatprep.subr.mxu0 0.0
        %184 = vmatpush2.msra.mxu0 0.0
        %185 = vmatprep.subr.mxu0 0.0
        %186 = vmatpush2.msra.mxu0 0.0
        %187 = vmatprep.subr.mxu0 0.0
        %188 = vmatpush2.msra.mxu0 0.0
        %189 = vmatprep.subr.mxu0 0.0
        %190 = vmatpush2.msra.mxu0 0.0
        %191 = vmatprep.subr.mxu0 0.0
        %192 = vmatpush2.msra.mxu0 0.0
        %193 = vmatprep.subr.mxu0 0.0
        %194 = vmatpush2.msra.mxu0 0.0
        %195 = vmatprep.subr.mxu0 0.0
        %196 = vmatpush2.msra.mxu0 0.0
        %197 = vmatprep.subr.mxu0 0.0
        %198 = vmatpush2.msra.mxu0 0.0
        %199 = vmatprep.subr.mxu0 0.0
        %200 = vmatpush2.msra.mxu0 0.0
        %201 = vmatprep.subr.mxu0 0.0
        %202 = vmatpush2.msra.mxu0 0.0
        %203 = vmatprep.subr.mxu0 0.0
        %204 = vmatpush2.msra.mxu0 0.0
        %205 = vmatprep.subr.mxu0 0.0
        %206 = vmatpush2.msra.mxu0 0.0
        %207 = vmatprep.subr.mxu0 0.0
        %208 = vmatpush2.msra.mxu0 0.0
        %209 = vmatprep.subr.mxu0 0.0
        %210 = vmatpush2.msra.mxu0 0.0
        %211 = vmatprep.subr.mxu0 0.0
        %212 = vmatpush2.msra.mxu0 0.0
        %213 = vmatprep.mubr.f32.mxu0 0.0
        %214 = vmatmul.mubr.f32.gmra.mxu0 %v143
        %v215 = vpop.f32.mrf.mxu0
        %v216 = vadd.f32 0.0, %v215
        %v217 = vpop.f32.mrf.mxu0
        %218 = vdwg.mxu0
        %219 = vst [vmem:[%s134] sm:$0xff] %v216
        %s220 = sand.u32 %s71, 1
        %s221 = scalar_lea.sflag [#allocation3], %s220
        %s222 = sand.u32 %s71, 1
        %s223 = smul.addr %s222, 8
        %s224 = scalar_lea.vmem [#allocation2], %s223
        // Predicated region
        $region29: #{tpu_custom_call.1} parent=27 // pred_check
          %p225 = pneg %p81
        $region30: #{tpu_custom_call.1} parent=27 // pred_check_branch
          %227 = sbr.rel (%p225) target = $region32
        $region31: #{tpu_custom_call.1} parent=27 // pred_region
          %s229 = ssub.s32 128, 128
          %230 = vsyncadd %s221, %s229
          %s231 = smul.addr %s16, 128
          %s232 = scalar_lea.hbm %s2, %s231
          %s234 = sshll.u32 %s224, 4
          %s235 = int_to_ptr.vmem [resolvable:$true] %s234
          %237 = dma.vmem_to_hbm [thread:$0]  %s235, 128, %s232, %s221
        $region32: #{tpu_custom_call.1} parent=27 // pred_fallthru
          _
      $region28: #{tpu_custom_call.1} parent=5 // pred_fallthru
        _
      %p238 = scmp.le.s32.totalorder 2, %s11
      // Predicated region
      $region33: #{tpu_custom_call.1} parent=5 // pred_check
        %p239 = pneg %p238
      $region34: #{tpu_custom_call.1} parent=5 // pred_check_branch
        %241 = sbr.rel (%p239) target = $region36
      $region35: #{tpu_custom_call.1} parent=5 // pred_region
        %s242 = ssub.s32 %s11, 2
        // Predicated region
        $region37: #{tpu_custom_call.1} parent=35 // pred_check
          %p243 = pneg %p87
        $region38: #{tpu_custom_call.1} parent=35 // pred_check_branch
          %245 = sbr.rel (%p243) target = $region40
        $region39: #{tpu_custom_call.1} parent=35 // pred_region
          %s246 = sand.u32 %s72, 1
          %s247 = scalar_lea.sflag [#allocation3], %s246
          %s248 = sand.u32 %s72, 1
          %s249 = smul.addr %s248, 8
          %s250 = scalar_lea.vmem [#allocation2], %s249
          %251 = dma.done %s247, 128
        $region40: #{tpu_custom_call.1} parent=35 // pred_fallthru
          _
      $region36: #{tpu_custom_call.1} parent=5 // pred_fallthru
        _
    $region6: #{tpu_custom_call.1} parent=1 // loop_footer
      %s15 = sadd.s32 1, %s11
    $region7: #{tpu_custom_call.1} parent=1 // loop_footer_branch
      %10 = sbr.rel target = $region3
    $region8: #{tpu_custom_call.1} parent=1 // loop_exit
      _
    %252 = vsyncpa [#allocation3], 1
    %s253 = scalar_lea.sflag [#allocation3], 1
    %254 = vsyncpa %s253, 1

</llo_original>
